<compile_context>
chip_gen: v5e
topology: v5e:2x2
jax: 0.10.0
libtpu: 0.0.40
codegen_flags: <defaults>
</compile_context>

<pallas_src>
import functools

import jax
import jax.numpy as jnp
from jax.experimental import pallas as pl
from jax.experimental.pallas import tpu as pltpu


# Keep at least this many row tiles: >= max(4, 2 * num_tensorcores) so the DMA
# pipeline overlaps and both v7x TensorCores get work.
_MIN_ROW_TILES = 8


def _single_tile_kernel(x_ref, y_ref, out_ref, *, n_rows, tile_n, mask_rows):
    """Fast path: all C classes fit one block -> one-pass CE, no scratch."""
    i = pl.program_id(0)
    x_in = x_ref[...]                          # (TN, C), input dtype (bf16 stays packed)
    y = y_ref[...]                             # (TN, 1) int32
    tc = x_in.shape[-1]

    # One-hot gather of the label logit: (1, C) lane iota vs y (TN, 1).
    cls_idx = jax.lax.broadcasted_iota(jnp.int32, (1, tc), 1)
    onehot = cls_idx == y
    xl = jnp.sum(jnp.where(onehot, x_in, jnp.zeros_like(x_in)),
                 axis=-1, keepdims=True).astype(jnp.float32)
    m = jnp.max(x_in, axis=-1, keepdims=True).astype(jnp.float32)

    x = x_in.astype(jnp.float32)               # f32 only for the exp/sum path
    l = jnp.sum(jnp.exp(x - m), axis=-1, keepdims=True)
    loss = m + jnp.log(l) - xl                 # (TN, 1)

    if mask_rows:
        row = i * tile_n + jax.lax.broadcasted_iota(jnp.int32, (tile_n, 1), 0)
        loss = jnp.where(row < n_rows, loss, 0.0)
    out_ref[...] = jnp.transpose(loss)         # lane-dense (1, TN) store


def _stream_kernel(x_ref, y_ref, out_ref, m_sc, l_sc, xl_sc, *,
                   n_rows, tile_n, mask_rows):
    """Class-axis streaming with online logsumexp (running m, l, label logit)."""
    i = pl.program_id(0)
    k = pl.program_id(1)

    @pl.when(k == 0)
    def _init():
        m_sc[...] = jnp.full_like(m_sc, -jnp.inf)
        l_sc[...] = jnp.zeros_like(l_sc)
        xl_sc[...] = jnp.zeros_like(xl_sc)

    x_in = x_ref[...]                          # (TN, TC), input dtype
    y = y_ref[...]                             # (TN, 1) int32
    tc = x_in.shape[-1]

    # Label gather: compare/select in the input dtype, cast the tiny (TN,1)
    # result to f32 for accumulation.
    cls_idx = jax.lax.broadcasted_iota(jnp.int32, (1, tc), 1) + k * tc
    onehot = cls_idx == y
    xl_sc[...] += jnp.sum(jnp.where(onehot, x_in, jnp.zeros_like(x_in)),
                          axis=-1, keepdims=True).astype(jnp.float32)
    tile_max = jnp.max(x_in, axis=-1, keepdims=True).astype(jnp.float32)

    # Online (streaming) max / sum-exp across class tiles (f32 accumulation).
    x = x_in.astype(jnp.float32)
    m_prev = m_sc[...]
    m_new = jnp.maximum(m_prev, tile_max)
    l_sc[...] = l_sc[...] * jnp.exp(m_prev - m_new) + jnp.sum(
        jnp.exp(x - m_new), axis=-1, keepdims=True)
    m_sc[...] = m_new

    @pl.when(k == pl.num_programs(1) - 1)
    def _finalize():
        loss = m_sc[...] + jnp.log(l_sc[...]) - xl_sc[...]      # (TN, 1)
        if mask_rows:
            row = i * tile_n + jax.lax.broadcasted_iota(jnp.int32, (tile_n, 1), 0)
            loss = jnp.where(row < n_rows, loss, 0.0)
        out_ref[...] = jnp.transpose(loss)                      # (1, TN) lane-dense


def _vmem_capacity_bytes():
    try:
        return int(pltpu.get_tpu_info().vmem_capacity_bytes)
    except Exception:
        return 64 << 20  # conservative (v7x-sized) fallback


def _tile_bytes(rows, cols, itemsize):
    """VMEM footprint of a (rows, cols) buffer including (8,128) tile padding."""
    sub = 8 if itemsize >= 4 else (16 if itemsize == 2 else 32)
    r = -(-rows // sub) * sub
    c = -(-cols // 128) * 128
    return r * c * itemsize


def _choose_tiles(N, C, itemsize, vmem_cap):
    """Pick (tile_n, tile_c): full-C bias, ~vmem_cap/10 x-blocks, >= _MIN_ROW_TILES row tiles."""
    sub = 8 if itemsize >= 4 else (16 if itemsize == 2 else 32)
    # x-block target: ~1/10 of this generation's VMEM (double-buffered x
    # dominates). v5e/v6e (128 MiB) -> ~12.8 MiB blocks, v7x (64 MiB) -> ~6.4 MiB.
    target = int(min(max(vmem_cap // 10, 4 << 20), 16 << 20))

    # Class (lane) axis: prefer full C whenever a sublane-slab fits the budget
    # (fewest lane-sparse online-softmax correction passes). A non-128-multiple
    # C must be taken whole anyway (lane dim must be 128-multiple or full dim).
    if C % 128 != 0 or sub * C * itemsize <= target:
        tile_c = C
    else:
        tile_c = C
        cand = min((target // (sub * itemsize)) // 128 * 128, C)
        cand = max(cand, 128)
        while cand >= 128:
            if C % cand == 0:
                tile_c = cand
                break
            cand -= 128

    # Row (sublane) axis: spend the leftover budget, but keep >= _MIN_ROW_TILES
    # row tiles. N need not divide tile_n (padded rows are masked in-kernel).
    tile_n = max(sub, (target // max(1, tile_c * itemsize)) // sub * sub)
    rows_per_split = -(-N // _MIN_ROW_TILES)            # ceil(N / MIN_ROW_TILES)
    rows_per_split = -(-rows_per_split // sub) * sub    # round up to sublane mult
    tile_n = min(tile_n, max(sub, rows_per_split))
    tile_n = min(tile_n, -(-N // sub) * sub)            # don't exceed padded N
    return tile_n, tile_c


def soft_target_cross_entropy(x, y, reduction="mean", tile_n=None, tile_c=None):
    """x: (N, C) logits (f32 or bf16 -- bf16 recommended on v5e), y: (N,) int labels."""
    if reduction not in ("mean", "none"):
        raise NotImplementedError(reduction)

    N, C = x.shape
    itemsize = jnp.dtype(x.dtype).itemsize
    vmem_cap = _vmem_capacity_bytes()
    auto_n, auto_c = _choose_tiles(N, C, itemsize, vmem_cap)
    tile_n = auto_n if tile_n is None else int(tile_n)
    tile_c = auto_c if tile_c is None else int(tile_c)
    assert C % tile_c == 0, "tile_c must divide C"
    assert tile_c == C or tile_c % 128 == 0, "tile_c must be a 128-multiple or C"
    assert tile_n % 8 == 0, "tile_n must be a multiple of 8"

    num_row_tiles = -(-N // tile_n)     # ceil: last block padded, masked in-kernel
    num_cls_tiles = C // tile_c
    mask_rows = (N % tile_n) != 0

    y2 = y.astype(jnp.int32).reshape(N, 1)

    # Lane-dense per-row-loss output; padded rows are zeroed in-kernel so the
    # "mean" reduction is a plain sum / N outside.
    out_shape = jax.ShapeDtypeStruct((num_row_tiles, tile_n), jnp.float32)
    out_spec = pl.BlockSpec((1, tile_n), lambda i, k: (i, 0))
    x_spec = pl.BlockSpec((tile_n, tile_c), lambda i, k: (i, k))
    y_spec = pl.BlockSpec((tile_n, 1), lambda i, k: (i, 0))

    if num_cls_tiles == 1:
        kern = functools.partial(_single_tile_kernel, n_rows=N, tile_n=tile_n,
                                 mask_rows=mask_rows)
        scratch = []
    else:
        kern = functools.partial(_stream_kernel, n_rows=N, tile_n=tile_n,
                                 mask_rows=mask_rows)
        scratch = [pltpu.VMEM((tile_n, 1), jnp.float32),   # running max m
                   pltpu.VMEM((tile_n, 1), jnp.float32),   # running sum-exp l
                   pltpu.VMEM((tile_n, 1), jnp.float32)]   # gathered label logit

    # VMEM accounting with the (8,128) lane padding of the narrow buffers.
    x_blk = _tile_bytes(tile_n, tile_c, itemsize)
    y_blk = _tile_bytes(tile_n, 1, 4)
    o_blk = _tile_bytes(1, tile_n, 4)
    live = 2 * (x_blk + y_blk + o_blk) + len(scratch) * _tile_bytes(tile_n, 1, 4)
    vmem_limit = int(min(max(int(1.3 * live), 32 << 20), vmem_cap))

    out = pl.pallas_call(
        kern,
        out_shape=out_shape,
        grid=(num_row_tiles, num_cls_tiles),
        in_specs=[x_spec, y_spec],
        out_specs=out_spec,
        scratch_shapes=scratch,
        compiler_params=pltpu.CompilerParams(
            dimension_semantics=("parallel", "arbitrary"),
            vmem_limit_bytes=vmem_limit,
        ),
    )(x, y2)

    if reduction == "mean":
        return jnp.sum(out) / N
    return out.reshape(-1)[:N]


if __name__ == "__main__":
    key = jax.random.PRNGKey(0)

    def ref_loss(xf, yi):
        return -jnp.take_along_axis(
            jax.nn.log_softmax(xf, axis=-1), yi[:, None], axis=-1)[:, 0]

    # Case 1: small f32, single class tile (auto-tiled fast path, grid=(1,1)).
    k1, k2, key = jax.random.split(key, 3)
    N, C = 8, 32
    x = jax.random.normal(k1, (N, C), dtype=jnp.float32)
    y = jax.random.randint(k2, (N,), 0, C, dtype=jnp.int32)
    out_mean = jax.block_until_ready(soft_target_cross_entropy(x, y, "mean"))
    out_none = jax.block_until_ready(soft_target_cross_entropy(x, y, "none"))
    r = ref_loss(x, y)
    assert jnp.allclose(out_none, r, atol=1e-5, rtol=1e-5)
    assert jnp.allclose(out_mean, jnp.mean(r), atol=1e-5, rtol=1e-5)

    # Case 2: bf16 + forced class streaming + non-divisible N (row pad + mask),
    # exercising the online-logsumexp path with deferred f32 upcast.
    k3, k4, key = jax.random.split(key, 3)
    N2, C2 = 37, 256
    x2 = jax.random.normal(k3, (N2, C2), dtype=jnp.bfloat16)
    y2 = jax.random.randint(k4, (N2,), 0, C2, dtype=jnp.int32)
    out2_mean = jax.block_until_ready(
        soft_target_cross_entropy(x2, y2, "mean", tile_n=16, tile_c=128))
    out2_none = jax.block_until_ready(
        soft_target_cross_entropy(x2, y2, "none", tile_n=16, tile_c=128))
    r2 = ref_loss(x2.astype(jnp.float32), y2)
    assert jnp.allclose(out2_none, r2, atol=2e-3, rtol=2e-3)
    assert jnp.allclose(out2_mean, jnp.mean(r2), atol=2e-3, rtol=2e-3)

    # Case 3: awkward N with default auto-tiling and a non-128-multiple C
    # (full-C fast path, multiple row tiles, last one padded+masked).
    k5, k6, key = jax.random.split(key, 3)
    N3, C3 = 37, 1000
    x3 = jax.random.normal(k5, (N3, C3), dtype=jnp.float32)
    y3 = jax.random.randint(k6, (N3,), 0, C3, dtype=jnp.int32)
    out3_none = jax.block_until_ready(soft_target_cross_entropy(x3, y3, "none"))
    out3_mean = jax.block_until_ready(soft_target_cross_entropy(x3, y3, "mean"))
    r3 = ref_loss(x3, y3)
    assert jnp.allclose(out3_none, r3, atol=1e-5, rtol=1e-5)
    assert jnp.allclose(out3_mean, jnp.mean(r3), atol=1e-5, rtol=1e-5)

    print("KERNEL_OK")
</pallas_src>

<mosaic_0001>
module attributes {stable_mosaic.version = 11 : i64} {
  func.func @_single_tile_kernel(%arg0: i32, %arg1: i32, %arg2: memref<8x32xf32, #tpu.memory_space<vmem>>, %arg3: memref<8x1xi32, #tpu.memory_space<vmem>>, %arg4: memref<1x8xf32, #tpu.memory_space<vmem>>) attributes {dimension_semantics = [#tpu.dimension_semantics<parallel>, #tpu.dimension_semantics<arbitrary>], iteration_bounds = array<i64: 1, 1>, scalar_prefetch = 0 : i64, scratch_operands = 0 : i64, tpu.core_type = #tpu.core_type<tc>, window_params = [{transform_indices = @transform_0, window_bounds = array<i64: 8, 32>}, {transform_indices = @transform_1, window_bounds = array<i64: 8, 1>}, {transform_indices = @transform_2, window_bounds = array<i64: 1, 8>}]} {
    %c0 = arith.constant 0 : index
    %c0_0 = arith.constant 0 : index
    %0 = vector.load %arg2[%c0, %c0_0] : memref<8x32xf32, #tpu.memory_space<vmem>>, vector<8x32xf32>
    %c0_1 = arith.constant 0 : index
    %c0_2 = arith.constant 0 : index
    %1 = vector.load %arg3[%c0_1, %c0_2] : memref<8x1xi32, #tpu.memory_space<vmem>>, vector<8x1xi32>
    %2 = tpu.iota {dimensions = array<i32: 1>} : vector<1x32xi32>
    %3 = vector.broadcast %2 : vector<1x32xi32> to vector<8x32xi32>
    %4 = vector.broadcast %1 : vector<8x1xi32> to vector<8x32xi32>
    %5 = arith.cmpi eq, %3, %4 : vector<8x32xi32>
    %cst = arith.constant 0.000000e+00 : f32
    %6 = vector.broadcast %cst : f32 to vector<8x32xf32>
    %7 = arith.select %5, %0, %6 : vector<8x32xi1>, vector<8x32xf32>
    %cst_3 = arith.constant dense<0.000000e+00> : vector<8xf32>
    %8 = vector.multi_reduction <add>, %7, %cst_3 [1] : vector<8x32xf32> to vector<8xf32>
    %9 = vector.shape_cast %8 : vector<8xf32> to vector<8x1xf32>
    %cst_4 = arith.constant dense<0xFF800000> : vector<8xf32>
    %10 = vector.multi_reduction <maximumf>, %0, %cst_4 [1] : vector<8x32xf32> to vector<8xf32>
    %11 = vector.shape_cast %10 : vector<8xf32> to vector<8x1xf32>
    %12 = vector.broadcast %11 : vector<8x1xf32> to vector<8x32xf32>
    %13 = arith.subf %0, %12 : vector<8x32xf32>
    %14 = math.exp %13 : vector<8x32xf32>
    %cst_5 = arith.constant dense<0.000000e+00> : vector<8xf32>
    %15 = vector.multi_reduction <add>, %14, %cst_5 [1] : vector<8x32xf32> to vector<8xf32>
    %16 = vector.shape_cast %15 : vector<8xf32> to vector<8x1xf32>
    %17 = math.log %16 : vector<8x1xf32>
    %18 = arith.addf %11, %17 : vector<8x1xf32>
    %19 = arith.subf %18, %9 : vector<8x1xf32>
    %20 = tpu.transpose %19, [1, 0] : vector<8x1xf32> -> vector<1x8xf32>
    %c0_6 = arith.constant 0 : index
    %c0_7 = arith.constant 0 : index
    %21 = vector.load %arg4[%c0_6, %c0_7] : memref<1x8xf32, #tpu.memory_space<vmem>>, vector<1x8xf32>
    tpu.vector_store %arg4[%c0_6, %c0_7], %20 {strides = array<i32>} : memref<1x8xf32, #tpu.memory_space<vmem>>, vector<1x8xf32>,
    return
  }
  func.func @transform_0(%arg0: i32, %arg1: i32) -> (i32, i32) {
    %c0_i32 = arith.constant 0 : i32
    return %arg0, %arg1 : i32, i32
  }
  func.func @transform_1(%arg0: i32, %arg1: i32) -> (i32, i32) {
    %c0_i32 = arith.constant 0 : i32
    %c0_i32_0 = arith.constant 0 : i32
    return %arg0, %c0_i32 : i32, i32
  }
  func.func @transform_2(%arg0: i32, %arg1: i32) -> (i32, i32) {
    %c0_i32 = arith.constant 0 : i32
    %c0_i32_0 = arith.constant 0 : i32
    return %arg0, %c0_i32 : i32, i32
  }
}

</mosaic_0001>

<llo_original>
// kernel: tpu_custom_call.1
$region0: #{tpu_custom_call.1}
  #allocation0 [shape = 'u32[]', space=smem, size = 0x4, offset = 0x4, fixed_abs, tag = 'smem constant byte address 0x4 - core index']
  #allocation1 [shape = 'u32[72,128]{1,0:T(1,128)}', space=vmem, size = 0x9000, scoped, tag = 'internal scratch']
  %s0 = inlined_call_operand.vmem [shape: f32[8,32], index: 0, kind: input, shape index: {}]
  %s1 = inlined_call_operand.vmem [shape: s32[8,1], index: 1, kind: input, shape index: {}]
  %s2 = inlined_call_operand.hbm [shape: f32[1,8], index: 2, kind: output, shape index: {}]
  %s3 = sld [smem:[#allocation0]]
  $region18: #{tpu_custom_call.1} parent=0
    _
  %s5 = ssub.s32 1, %s3
  %s6 = scalar_select 0, %s5, %s3
  $region1: #{tpu_custom_call.1} parent=0
    #allocation2 [shape = 'u8[512]{0}', space=vmem, size = 0x400, scoped, tag = 'output window, operand 0, single buffered']
    #allocation3 [shape = 's32[1]{0}', space=sflag, size = 0x4, scoped, tag = 'scoped memory for tpu_custom_call.1']
    %7 = vsyncpa [#allocation3], 0
    // Predicated region
    $region2: #{tpu_custom_call.1} parent=1 // pred_check
      _
    $region3: #{tpu_custom_call.1} parent=1 // pred_check_branch
      %9 = sbr.rel (0) target = $region5
    $region4: #{tpu_custom_call.1} parent=1 // pred_region
      _
    $region5: #{tpu_custom_call.1} parent=1 // pred_fallthru
      _
    // Predicated region
    $region6: #{tpu_custom_call.1} parent=1 // pred_check
      _
    $region7: #{tpu_custom_call.1} parent=1 // pred_check_branch
      %11 = sbr.rel (0) target = $region9
    $region8: #{tpu_custom_call.1} parent=1 // pred_region
      _
    $region9: #{tpu_custom_call.1} parent=1 // pred_fallthru
      _
    %v12 = vld [vmem:[%s0] sm:$0xff]
    %v13 = vld [vmem:[%s1] sm:$0xff]
    %v14 = vlaneseq
    %v15 = vand.u32 %v14, 127
    %16 = vset.pattern.permute.xlu0 0
    %17 = vperm.xlu0 %16, %v13
    %v18 = vpop.permute.xlu0 %17
    %vm19 = vcmp.eq.s32.totalorder %v15, %v18
    %v20 = vsel %vm19, %v12, 0.0
    %vm21 = vcmask 261120
    %v22 = vsel %vm21, %v20, 0.0
    %23 = vadd.xlane.f32.xlu0 %v22
    %v24 = vpop.xlane.xlu0 %23
    %v25 = vsel %vm21, %v12, -inf
    %26 = vmax.xlane.f32.xlu0 %v25
    %v27 = vpop.xlane.xlu0 %26
    %v28 = vsub.f32 %v12, %v27
    %v29 = vmul.f32 %v28, 1.442695
    %v30 = vpow.pop %v29
    %v31 = vsel %vm21, %v30, 0.0
    %32 = vadd.xlane.f32.xlu0 %v31
    %v33 = vpop.xlane.xlu0 %32
    %v34 = vlog2.pop %v33
    %v35 = vmul.f32 %v34, 0.6931472
    %v36 = vadd.f32 %v27, %v35
    %v37 = vsub.f32 %v36, %v24
    %38 = vxpose.xlu0.b32.start [1/16] %v37, 128
    %39 = vxpose.xlu0.b32.cont [2/16] 0.0, 128
    %40 = vxpose.xlu0.b32.cont [3/16] 0.0, 128
    %41 = vxpose.xlu0.b32.cont [4/16] 0.0, 128
    %42 = vxpose.xlu0.b32.cont [5/16] 0.0, 128
    %43 = vxpose.xlu0.b32.cont [6/16] 0.0, 128
    %44 = vxpose.xlu0.b32.cont [7/16] 0.0, 128
    %45 = vxpose.xlu0.b32.cont [8/16] 0.0, 128
    %46 = vxpose.xlu0.b32.cont [9/16] 0.0, 128
    %47 = vxpose.xlu0.b32.cont [10/16] 0.0, 128
    %48 = vxpose.xlu0.b32.cont [11/16] 0.0, 128
    %49 = vxpose.xlu0.b32.cont [12/16] 0.0, 128
    %50 = vxpose.xlu0.b32.cont [13/16] 0.0, 128
    %51 = vxpose.xlu0.b32.cont [14/16] 0.0, 128
    %52 = vxpose.xlu0.b32.cont [15/16] 0.0, 128
    %53 = vxpose.xlu0.b32.end [16/16] 0.0, 128
    %v54 = vpop.trf.xlu0
    %v55 = vpop.trf.xlu0
    %v56 = vpop.trf.xlu0
    %v57 = vpop.trf.xlu0
    %v58 = vpop.trf.xlu0
    %v59 = vpop.trf.xlu0
    %v60 = vpop.trf.xlu0
    %v61 = vpop.trf.xlu0
    %v62 = vpop.trf.xlu0
    %v63 = vpop.trf.xlu0
    %v64 = vpop.trf.xlu0
    %v65 = vpop.trf.xlu0
    %v66 = vpop.trf.xlu0
    %v67 = vpop.trf.xlu0
    %v68 = vpop.trf.xlu0
    %v69 = vpop.trf.xlu0
    %vm70 = vcmask 57344
    %71 = vst.msk [vmem:[#allocation2] sm:$0x1] %vm70, %v54
    // Predicated region
    $region10: #{tpu_custom_call.1} parent=1 // pred_check
      _
    $region11: #{tpu_custom_call.1} parent=1 // pred_check_branch
      %73 = sbr.rel (0) target = $region13
    $region12: #{tpu_custom_call.1} parent=1 // pred_region
      %75 = vsyncadd [#allocation3], 0
      %s77 = sshll.u32 [#allocation2], 4
      %s78 = int_to_ptr.vmem [resolvable:$true] %s77
      %s79 = sshll.u32 %s2, 4
      %s80 = int_to_ptr.hbm [resolvable:$true] %s79
      %82 = dma.vmem_to_hbm [thread:$0]  %s78, 16, %s80, [#allocation3]
    $region13: #{tpu_custom_call.1} parent=1 // pred_fallthru
      _
    // Predicated region
    $region14: #{tpu_custom_call.1} parent=1 // pred_check
      _
    $region15: #{tpu_custom_call.1} parent=1 // pred_check_branch
      %84 = sbr.rel (0) target = $region17
    $region16: #{tpu_custom_call.1} parent=1 // pred_region
      %86 = dma.done [#allocation3], 16
    $region17: #{tpu_custom_call.1} parent=1 // pred_fallthru
      _
    %87 = vsyncpa [#allocation3], 1

</llo_original>
